<compile_context>
chip_gen: v5e
topology: v5e:2x2
jax: 0.10.0
libtpu: 0.0.40
codegen_flags: <defaults>
</compile_context>

<pallas_src>
import functools

import numpy as np

import jax
import jax.numpy as jnp
from jax import lax
from jax.experimental import pallas as pl
from jax.experimental.pallas import tpu as pltpu


def _round_up(x, m):
    return (x + m - 1) // m * m


def _make_fused_conv_kernel(W, HW, P):
    """Builds the fused conv_in -> conv_out kernel for one (C, H*W) frame."""

    def conv3x3(src, wk, bias, m_ref, xp_ref):
        """3x3 'same' conv on a lane-dense (C, H*W) tile.

        src   : (C, HW) f32 value        (channels on sublanes, H*W on lanes)
        wk    : (Cout_p, 9*C) f32 value  (tap-major packed weights)
        bias  : (Cout_p, 1) f32 value
        m_ref : (3, HW) column-validity masks (rows: dw = -1, 0, +1)
        xp_ref: (C, HW + 2*P) VMEM scratch, used as zero-padded flat frame
        """
        C, _ = src.shape
        # Zero the halo strips and write the frame; every tap window below is
        # then an in-bounds contiguous lane slice of this scratch.
        zer = jnp.zeros((C, P), jnp.float32)
        xp_ref[:, :P] = zer
        xp_ref[:, P + HW:P + HW + P] = zer
        xp_ref[:, P:P + HW] = src

        cols = []
        for kh in range(3):            # dh = kh - 1
            for kw in range(3):        # dw = kw - 1
                off = (kh - 1) * W + (kw - 1)
                tap = xp_ref[:, P + off:P + off + HW]     # == src[p + off], 0 above/below
                if kw != 1:            # zero reads that wrapped across an image row
                    tap = tap * m_ref[kw:kw + 1, :]
                cols.append(tap)
        # im2col block (9*C, HW): K on sublanes -> one MXU matmul (K = 9*C)
        # instead of nine tiny ones; f32 accumulation on the MXU.
        col = jnp.concatenate(cols, axis=0)
        return jnp.dot(wk, col, preferred_element_type=jnp.float32) + bias

    def kernel(x_ref, wi_ref, bi_ref, wo_ref, bo_ref, m_ref, o_ref,
               xp_in_ref, xp_mid_ref):
        x = x_ref[...].astype(jnp.float32)                           # (Cin, HW)
        # conv_in: the intermediate stays in VMEM/vregs (never written to HBM).
        h = conv3x3(x, wi_ref[...], bi_ref[...], m_ref, xp_in_ref)   # (Cinter_p, HW)
        # PSA/SGE of the reference forward is dead code (result discarded) and
        # dec_att is disabled under the assumed config -> nothing else here.
        y = conv3x3(h, wo_ref[...], bo_ref[...], m_ref, xp_mid_ref)  # (Cout_p, HW)
        o_ref[...] = y.astype(o_ref.dtype)

    return kernel


@functools.partial(jax.jit, static_argnames=("cout",))
def hierar_att_dec_fused(x_nchw, wk_in, bk_in, wk_out, bk_out, *, cout):
    """Fused conv3x3 -> conv3x3 ('same', stride 1) on NCHW input."""
    N, cin, H, W = x_nchw.shape
    HW = H * W
    cinter_p = wk_in.shape[0]
    cout_p = wk_out.shape[0]
    assert wk_in.shape[1] == 9 * cin and wk_out.shape[1] == 9 * cinter_p

    P = W + 1  # flat halo pad: covers all tap offsets in [-(W+1), W+1]

    # Column-validity masks for horizontal taps (host constants, 3*HW floats).
    col_idx = np.arange(HW) % W
    wmask = np.ones((3, HW), np.float32)
    wmask[0, col_idx == 0] = 0.0          # dw = -1 invalid at w == 0
    wmask[2, col_idx == W - 1] = 0.0      # dw = +1 invalid at w == W-1
    wmask = jnp.asarray(wmask)

    # Free reshape: NCHW is already channel-major, H*W lands on the lane axis.
    x_flat = x_nchw.reshape(N, cin, HW)

    kernel = _make_fused_conv_kernel(W, HW, P)

    flops = 2 * N * HW * 9 * (cin * cinter_p + cinter_p * cout_p)
    bytes_accessed = 4 * (x_flat.size + wk_in.size + bk_in.size + wk_out.size
                          + bk_out.size + wmask.size + N * cout_p * HW)

    out = pl.pallas_call(
        kernel,
        out_shape=jax.ShapeDtypeStruct((N, cout_p, HW), x_nchw.dtype),
        grid_spec=pltpu.PrefetchScalarGridSpec(
            num_scalar_prefetch=0,
            # One batch element per grid step.
            # TODO(synk): for production H*W*C, add an H-tile grid axis (2-row
            # halo) so blocks stay small on v7x's 64 MiB VMEM and both v7x
            # TensorCores get work when N == 1.
            grid=(N,),
            in_specs=[
                pl.BlockSpec((None, cin, HW), lambda n: (n, 0, 0)),
                pl.BlockSpec((cinter_p, 9 * cin), lambda n: (0, 0)),
                pl.BlockSpec((cinter_p, 1), lambda n: (0, 0)),
                pl.BlockSpec((cout_p, 9 * cinter_p), lambda n: (0, 0)),
                pl.BlockSpec((cout_p, 1), lambda n: (0, 0)),
                pl.BlockSpec((3, HW), lambda n: (0, 0)),
            ],
            out_specs=pl.BlockSpec((None, cout_p, HW), lambda n: (n, 0, 0)),
            scratch_shapes=[
                pltpu.VMEM((cin, HW + 2 * P), jnp.float32),       # padded x frame
                pltpu.VMEM((cinter_p, HW + 2 * P), jnp.float32),  # padded intermediate
            ],
        ),
        compiler_params=pltpu.CompilerParams(
            dimension_semantics=("parallel",)),
        cost_estimate=pl.CostEstimate(
            flops=flops, transcendentals=0, bytes_accessed=bytes_accessed),
    )(x_flat, wk_in, bk_in, wk_out, bk_out, wmask)

    return out[:, :cout, :].reshape(N, cout, H, W)


class HierarAttDecBlkPallas:
    """JAX/Pallas re-implementation of HierarAttDecBlk's forward pass."""

    def __init__(self, in_channels=16, out_channels=None, key=None):
        if out_channels is None:
            out_channels = in_channels
        # config.dec_channels_inter == 'adap' (assumed; Config() not provided).
        inter_channels = in_channels // 4
        self.split_y = 8
        self.split_x = 8
        self.in_channels = in_channels
        self.inter_channels = inter_channels
        self.out_channels = out_channels
        if key is None:
            key = jax.random.PRNGKey(0)
        k1, k2, k3, k4 = jax.random.split(key, 4)

        def _conv_init(kw_, kb_, cin, cout):
            bound = 1.0 / float(np.sqrt(cin * 9.0))
            w = jax.random.uniform(kw_, (3, 3, cin, cout), jnp.float32, -bound, bound)
            b = jax.random.uniform(kb_, (cout,), jnp.float32, -bound, bound)
            return w, b

        # HWIO-layout weights (kept for the pure-JAX reference check).
        self.w_in, self.b_in = _conv_init(k1, k2, in_channels, inter_channels)
        self.w_out, self.b_out = _conv_init(k3, k4, inter_channels, out_channels)

        # Pre-packed 2-D kernel weights: (Cout_p, 9*Cin_p), taps major, with
        # channel counts zero-padded to multiples of 8 for tile-aligned im2col.
        ci_p = _round_up(inter_channels, 8)
        co_p = _round_up(out_channels, 8)

        wk_in = jnp.transpose(self.w_in, (3, 0, 1, 2)).reshape(
            inter_channels, 9 * in_channels)
        self.wk_in = jnp.pad(wk_in, ((0, ci_p - inter_channels), (0, 0)))
        self.bk_in = jnp.pad(self.b_in, (0, ci_p - inter_channels)).reshape(ci_p, 1)

        w_out_p = jnp.pad(self.w_out,
                          ((0, 0), (0, 0), (0, ci_p - inter_channels), (0, 0)))
        wk_out = jnp.transpose(w_out_p, (3, 0, 1, 2)).reshape(out_channels, 9 * ci_p)
        self.wk_out = jnp.pad(wk_out, ((0, co_p - out_channels), (0, 0)))
        self.bk_out = jnp.pad(self.b_out, (0, co_p - out_channels)).reshape(co_p, 1)

    def __call__(self, x_nchw):
        # TODO(synk): for production sizes on v6e/v7x, cast activations/weights
        # to bf16 at this boundary (keep f32 MXU accumulation); kept f32 here
        # for exact verification against the f32 reference.
        return hierar_att_dec_fused(x_nchw, self.wk_in, self.bk_in,
                                    self.wk_out, self.bk_out,
                                    cout=self.out_channels)


def _reference_forward(blk, x_nchw):
    """Pure-JAX reference using lax.conv_general_dilated (for verification)."""
    x = jnp.transpose(x_nchw, (0, 2, 3, 1))
    dn = ("NHWC", "HWIO", "NHWC")
    x = lax.conv_general_dilated(x, blk.w_in, (1, 1), "SAME",
                                 dimension_numbers=dn) + blk.b_in
    x = lax.conv_general_dilated(x, blk.w_out, (1, 1), "SAME",
                                 dimension_numbers=dn) + blk.b_out
    return jnp.transpose(x, (0, 3, 1, 2))


if __name__ == "__main__":
    key = jax.random.PRNGKey(0)
    k_x, k_p = jax.random.split(key)

    N, C, H, W = 2, 16, 16, 16          # small shapes; H, W divisible by split=8
    x = jax.random.normal(k_x, (N, C, H, W), jnp.float32)

    blk = HierarAttDecBlkPallas(in_channels=C, key=k_p)

    out = jax.block_until_ready(blk(x))
    ref = jax.block_until_ready(_reference_forward(blk, x))

    assert out.shape == (N, C, H, W), out.shape
    assert jnp.allclose(out, ref, atol=1e-4, rtol=1e-4), \
        float(jnp.max(jnp.abs(out - ref)))

    print("KERNEL_OK")
</pallas_src>

<mosaic_0001>
module attributes {stable_mosaic.version = 11 : i64} {
  func.func @kernel(%arg0: i32, %arg1: memref<1x16x256xf32, #tpu.memory_space<vmem>>, %arg2: memref<8x144xf32, #tpu.memory_space<vmem>>, %arg3: memref<8x1xf32, #tpu.memory_space<vmem>>, %arg4: memref<16x72xf32, #tpu.memory_space<vmem>>, %arg5: memref<16x1xf32, #tpu.memory_space<vmem>>, %arg6: memref<3x256xf32, #tpu.memory_space<vmem>>, %arg7: memref<1x16x256xf32, #tpu.memory_space<vmem>>, %arg8: memref<16x290xf32, #tpu.memory_space<vmem>>, %arg9: memref<8x290xf32, #tpu.memory_space<vmem>>) attributes {dimension_semantics = [#tpu.dimension_semantics<parallel>], iteration_bounds = array<i64: 2>, scalar_prefetch = 0 : i64, scratch_operands = 2 : i64, tpu.core_type = #tpu.core_type<tc>, window_params = [{transform_indices = @transform_0, window_bounds = array<i64: 1, 16, 256>}, {pipeline_mode = #tpu.pipeline_mode<synchronous>, transform_indices = @transform_1, window_bounds = array<i64: 8, 144>}, {pipeline_mode = #tpu.pipeline_mode<synchronous>, transform_indices = @transform_2, window_bounds = array<i64: 8, 1>}, {pipeline_mode = #tpu.pipeline_mode<synchronous>, transform_indices = @transform_3, window_bounds = array<i64: 16, 72>}, {pipeline_mode = #tpu.pipeline_mode<synchronous>, transform_indices = @transform_4, window_bounds = array<i64: 16, 1>}, {pipeline_mode = #tpu.pipeline_mode<synchronous>, transform_indices = @transform_5, window_bounds = array<i64: 3, 256>}, {transform_indices = @transform_6, window_bounds = array<i64: 1, 16, 256>}]} {
    %c0 = arith.constant 0 : index
    %c0_0 = arith.constant 0 : index
    %c0_1 = arith.constant 0 : index
    %0 = vector.load %arg1[%c0, %c0_0, %c0_1] : memref<1x16x256xf32, #tpu.memory_space<vmem>>, vector<1x16x256xf32>
    %1 = vector.shape_cast %0 : vector<1x16x256xf32> to vector<16x256xf32>
    %c0_2 = arith.constant 0 : index
    %c0_3 = arith.constant 0 : index
    %2 = vector.load %arg2[%c0_2, %c0_3] : memref<8x144xf32, #tpu.memory_space<vmem>>, vector<8x144xf32>
    %c0_4 = arith.constant 0 : index
    %c0_5 = arith.constant 0 : index
    %3 = vector.load %arg3[%c0_4, %c0_5] : memref<8x1xf32, #tpu.memory_space<vmem>>, vector<8x1xf32>
    %cst = arith.constant 0.000000e+00 : f32
    %4 = vector.broadcast %cst : f32 to vector<16x17xf32>
    %c0_6 = arith.constant 0 : index
    %c0_7 = arith.constant 0 : index
    %5 = vector.load %arg8[%c0_6, %c0_7] : memref<16x290xf32, #tpu.memory_space<vmem>>, vector<16x17xf32>
    tpu.vector_store %arg8[%c0_6, %c0_7], %4 {strides = array<i32>} : memref<16x290xf32, #tpu.memory_space<vmem>>, vector<16x17xf32>,
    %c0_8 = arith.constant 0 : index
    %c273 = arith.constant 273 : index
    %6 = vector.load %arg8[%c0_8, %c273] : memref<16x290xf32, #tpu.memory_space<vmem>>, vector<16x17xf32>
    tpu.vector_store %arg8[%c0_8, %c273], %4 {strides = array<i32>} : memref<16x290xf32, #tpu.memory_space<vmem>>, vector<16x17xf32>,
    %c0_9 = arith.constant 0 : index
    %c17 = arith.constant 17 : index
    %7 = vector.load %arg8[%c0_9, %c17] : memref<16x290xf32, #tpu.memory_space<vmem>>, vector<16x256xf32>
    tpu.vector_store %arg8[%c0_9, %c17], %1 {strides = array<i32>} : memref<16x290xf32, #tpu.memory_space<vmem>>, vector<16x256xf32>,
    %c0_10 = arith.constant 0 : index
    %c0_11 = arith.constant 0 : index
    %8 = vector.load %arg8[%c0_10, %c0_11] : memref<16x290xf32, #tpu.memory_space<vmem>>, vector<16x256xf32>
    %c0_12 = arith.constant 0 : index
    %c0_13 = arith.constant 0 : index
    %9 = vector.load %arg6[%c0_12, %c0_13] : memref<3x256xf32, #tpu.memory_space<vmem>>, vector<1x256xf32>
    %10 = vector.broadcast %9 : vector<1x256xf32> to vector<16x256xf32>
    %11 = arith.mulf %8, %10 : vector<16x256xf32>
    %c0_14 = arith.constant 0 : index
    %c1 = arith.constant 1 : index
    %12 = vector.load %arg8[%c0_14, %c1] : memref<16x290xf32, #tpu.memory_space<vmem>>, vector<16x256xf32>
    %c0_15 = arith.constant 0 : index
    %c2 = arith.constant 2 : index
    %13 = vector.load %arg8[%c0_15, %c2] : memref<16x290xf32, #tpu.memory_space<vmem>>, vector<16x256xf32>
    %c2_16 = arith.constant 2 : index
    %c0_17 = arith.constant 0 : index
    %14 = vector.load %arg6[%c2_16, %c0_17] : memref<3x256xf32, #tpu.memory_space<vmem>>, vector<1x256xf32>
    %15 = vector.broadcast %14 : vector<1x256xf32> to vector<16x256xf32>
    %16 = arith.mulf %13, %15 : vector<16x256xf32>
    %c0_18 = arith.constant 0 : index
    %c16 = arith.constant 16 : index
    %17 = vector.load %arg8[%c0_18, %c16] : memref<16x290xf32, #tpu.memory_space<vmem>>, vector<16x256xf32>
    %c0_19 = arith.constant 0 : index
    %c0_20 = arith.constant 0 : index
    %18 = vector.load %arg6[%c0_19, %c0_20] : memref<3x256xf32, #tpu.memory_space<vmem>>, vector<1x256xf32>
    %19 = vector.broadcast %18 : vector<1x256xf32> to vector<16x256xf32>
    %20 = arith.mulf %17, %19 : vector<16x256xf32>
    %c0_21 = arith.constant 0 : index
    %c17_22 = arith.constant 17 : index
    %21 = vector.load %arg8[%c0_21, %c17_22] : memref<16x290xf32, #tpu.memory_space<vmem>>, vector<16x256xf32>
    %c0_23 = arith.constant 0 : index
    %c18 = arith.constant 18 : index
    %22 = vector.load %arg8[%c0_23, %c18] : memref<16x290xf32, #tpu.memory_space<vmem>>, vector<16x256xf32>
    %c2_24 = arith.constant 2 : index
    %c0_25 = arith.constant 0 : index
    %23 = vector.load %arg6[%c2_24, %c0_25] : memref<3x256xf32, #tpu.memory_space<vmem>>, vector<1x256xf32>
    %24 = vector.broadcast %23 : vector<1x256xf32> to vector<16x256xf32>
    %25 = arith.mulf %22, %24 : vector<16x256xf32>
    %c0_26 = arith.constant 0 : index
    %c32 = arith.constant 32 : index
    %26 = vector.load %arg8[%c0_26, %c32] : memref<16x290xf32, #tpu.memory_space<vmem>>, vector<16x256xf32>
    %c0_27 = arith.constant 0 : index
    %c0_28 = arith.constant 0 : index
    %27 = vector.load %arg6[%c0_27, %c0_28] : memref<3x256xf32, #tpu.memory_space<vmem>>, vector<1x256xf32>
    %28 = vector.broadcast %27 : vector<1x256xf32> to vector<16x256xf32>
    %29 = arith.mulf %26, %28 : vector<16x256xf32>
    %c0_29 = arith.constant 0 : index
    %c33 = arith.constant 33 : index
    %30 = vector.load %arg8[%c0_29, %c33] : memref<16x290xf32, #tpu.memory_space<vmem>>, vector<16x256xf32>
    %c0_30 = arith.constant 0 : index
    %c34 = arith.constant 34 : index
    %31 = vector.load %arg8[%c0_30, %c34] : memref<16x290xf32, #tpu.memory_space<vmem>>, vector<16x256xf32>
    %c2_31 = arith.constant 2 : index
    %c0_32 = arith.constant 0 : index
    %32 = vector.load %arg6[%c2_31, %c0_32] : memref<3x256xf32, #tpu.memory_space<vmem>>, vector<1x256xf32>
    %33 = vector.broadcast %32 : vector<1x256xf32> to vector<16x256xf32>
    %34 = arith.mulf %31, %33 : vector<16x256xf32>
    %35 = tpu.concatenate %11, %12, %16, %20, %21, %25, %29, %30, %34 in 0 : vector<16x256xf32>, vector<16x256xf32>, vector<16x256xf32>, vector<16x256xf32>, vector<16x256xf32>, vector<16x256xf32>, vector<16x256xf32>, vector<16x256xf32>, vector<16x256xf32> -> vector<144x256xf32>
    %cst_33 = arith.constant dense<0.000000e+00> : vector<8x256xf32>
    %36 = tpu.matmul %2, %35, %cst_33 {dimension_numbers = #tpu.dot_dimension_numbers<[1], [0], [0], [1], [0, 0, 1, 1], [], []>} : vector<8x144xf32>, vector<144x256xf32>, vector<8x256xf32> -> vector<8x256xf32>
    %37 = vector.broadcast %3 : vector<8x1xf32> to vector<8x256xf32>
    %38 = arith.addf %36, %37 : vector<8x256xf32>
    %c0_34 = arith.constant 0 : index
    %c0_35 = arith.constant 0 : index
    %39 = vector.load %arg4[%c0_34, %c0_35] : memref<16x72xf32, #tpu.memory_space<vmem>>, vector<16x72xf32>
    %c0_36 = arith.constant 0 : index
    %c0_37 = arith.constant 0 : index
    %40 = vector.load %arg5[%c0_36, %c0_37] : memref<16x1xf32, #tpu.memory_space<vmem>>, vector<16x1xf32>
    %cst_38 = arith.constant 0.000000e+00 : f32
    %41 = vector.broadcast %cst_38 : f32 to vector<8x17xf32>
    %c0_39 = arith.constant 0 : index
    %c0_40 = arith.constant 0 : index
    %42 = vector.load %arg9[%c0_39, %c0_40] : memref<8x290xf32, #tpu.memory_space<vmem>>, vector<8x17xf32>
    tpu.vector_store %arg9[%c0_39, %c0_40], %41 {strides = array<i32>} : memref<8x290xf32, #tpu.memory_space<vmem>>, vector<8x17xf32>,
    %c0_41 = arith.constant 0 : index
    %c273_42 = arith.constant 273 : index
    %43 = vector.load %arg9[%c0_41, %c273_42] : memref<8x290xf32, #tpu.memory_space<vmem>>, vector<8x17xf32>
    tpu.vector_store %arg9[%c0_41, %c273_42], %41 {strides = array<i32>} : memref<8x290xf32, #tpu.memory_space<vmem>>, vector<8x17xf32>,
    %c0_43 = arith.constant 0 : index
    %c17_44 = arith.constant 17 : index
    %44 = vector.load %arg9[%c0_43, %c17_44] : memref<8x290xf32, #tpu.memory_space<vmem>>, vector<8x256xf32>
    tpu.vector_store %arg9[%c0_43, %c17_44], %38 {strides = array<i32>} : memref<8x290xf32, #tpu.memory_space<vmem>>, vector<8x256xf32>,
    %c0_45 = arith.constant 0 : index
    %c0_46 = arith.constant 0 : index
    %45 = vector.load %arg9[%c0_45, %c0_46] : memref<8x290xf32, #tpu.memory_space<vmem>>, vector<8x256xf32>
    %c0_47 = arith.constant 0 : index
    %c0_48 = arith.constant 0 : index
    %46 = vector.load %arg6[%c0_47, %c0_48] : memref<3x256xf32, #tpu.memory_space<vmem>>, vector<1x256xf32>
    %47 = vector.broadcast %46 : vector<1x256xf32> to vector<8x256xf32>
    %48 = arith.mulf %45, %47 : vector<8x256xf32>
    %c0_49 = arith.constant 0 : index
    %c1_50 = arith.constant 1 : index
    %49 = vector.load %arg9[%c0_49, %c1_50] : memref<8x290xf32, #tpu.memory_space<vmem>>, vector<8x256xf32>
    %c0_51 = arith.constant 0 : index
    %c2_52 = arith.constant 2 : index
    %50 = vector.load %arg9[%c0_51, %c2_52] : memref<8x290xf32, #tpu.memory_space<vmem>>, vector<8x256xf32>
    %c2_53 = arith.constant 2 : index
    %c0_54 = arith.constant 0 : index
    %51 = vector.load %arg6[%c2_53, %c0_54] : memref<3x256xf32, #tpu.memory_space<vmem>>, vector<1x256xf32>
    %52 = vector.broadcast %51 : vector<1x256xf32> to vector<8x256xf32>
    %53 = arith.mulf %50, %52 : vector<8x256xf32>
    %c0_55 = arith.constant 0 : index
    %c16_56 = arith.constant 16 : index
    %54 = vector.load %arg9[%c0_55, %c16_56] : memref<8x290xf32, #tpu.memory_space<vmem>>, vector<8x256xf32>
    %c0_57 = arith.constant 0 : index
    %c0_58 = arith.constant 0 : index
    %55 = vector.load %arg6[%c0_57, %c0_58] : memref<3x256xf32, #tpu.memory_space<vmem>>, vector<1x256xf32>
    %56 = vector.broadcast %55 : vector<1x256xf32> to vector<8x256xf32>
    %57 = arith.mulf %54, %56 : vector<8x256xf32>
    %c0_59 = arith.constant 0 : index
    %c17_60 = arith.constant 17 : index
    %58 = vector.load %arg9[%c0_59, %c17_60] : memref<8x290xf32, #tpu.memory_space<vmem>>, vector<8x256xf32>
    %c0_61 = arith.constant 0 : index
    %c18_62 = arith.constant 18 : index
    %59 = vector.load %arg9[%c0_61, %c18_62] : memref<8x290xf32, #tpu.memory_space<vmem>>, vector<8x256xf32>
    %c2_63 = arith.constant 2 : index
    %c0_64 = arith.constant 0 : index
    %60 = vector.load %arg6[%c2_63, %c0_64] : memref<3x256xf32, #tpu.memory_space<vmem>>, vector<1x256xf32>
    %61 = vector.broadcast %60 : vector<1x256xf32> to vector<8x256xf32>
    %62 = arith.mulf %59, %61 : vector<8x256xf32>
    %c0_65 = arith.constant 0 : index
    %c32_66 = arith.constant 32 : index
    %63 = vector.load %arg9[%c0_65, %c32_66] : memref<8x290xf32, #tpu.memory_space<vmem>>, vector<8x256xf32>
    %c0_67 = arith.constant 0 : index
    %c0_68 = arith.constant 0 : index
    %64 = vector.load %arg6[%c0_67, %c0_68] : memref<3x256xf32, #tpu.memory_space<vmem>>, vector<1x256xf32>
    %65 = vector.broadcast %64 : vector<1x256xf32> to vector<8x256xf32>
    %66 = arith.mulf %63, %65 : vector<8x256xf32>
    %c0_69 = arith.constant 0 : index
    %c33_70 = arith.constant 33 : index
    %67 = vector.load %arg9[%c0_69, %c33_70] : memref<8x290xf32, #tpu.memory_space<vmem>>, vector<8x256xf32>
    %c0_71 = arith.constant 0 : index
    %c34_72 = arith.constant 34 : index
    %68 = vector.load %arg9[%c0_71, %c34_72] : memref<8x290xf32, #tpu.memory_space<vmem>>, vector<8x256xf32>
    %c2_73 = arith.constant 2 : index
    %c0_74 = arith.constant 0 : index
    %69 = vector.load %arg6[%c2_73, %c0_74] : memref<3x256xf32, #tpu.memory_space<vmem>>, vector<1x256xf32>
    %70 = vector.broadcast %69 : vector<1x256xf32> to vector<8x256xf32>
    %71 = arith.mulf %68, %70 : vector<8x256xf32>
    %72 = tpu.concatenate %48, %49, %53, %57, %58, %62, %66, %67, %71 in 0 : vector<8x256xf32>, vector<8x256xf32>, vector<8x256xf32>, vector<8x256xf32>, vector<8x256xf32>, vector<8x256xf32>, vector<8x256xf32>, vector<8x256xf32>, vector<8x256xf32> -> vector<72x256xf32>
    %cst_75 = arith.constant dense<0.000000e+00> : vector<16x256xf32>
    %73 = tpu.matmul %39, %72, %cst_75 {dimension_numbers = #tpu.dot_dimension_numbers<[1], [0], [0], [1], [0, 0, 1, 1], [], []>} : vector<16x72xf32>, vector<72x256xf32>, vector<16x256xf32> -> vector<16x256xf32>
    %74 = vector.broadcast %40 : vector<16x1xf32> to vector<16x256xf32>
    %75 = arith.addf %73, %74 : vector<16x256xf32>
    %c0_76 = arith.constant 0 : index
    %c0_77 = arith.constant 0 : index
    %c0_78 = arith.constant 0 : index
    %76 = vector.load %arg7[%c0_76, %c0_77, %c0_78] : memref<1x16x256xf32, #tpu.memory_space<vmem>>, vector<1x16x256xf32>
    %77 = vector.shape_cast %76 : vector<1x16x256xf32> to vector<16x256xf32>
    %78 = vector.shape_cast %75 : vector<16x256xf32> to vector<1x16x256xf32>
    tpu.vector_store %arg7[%c0_76, %c0_77, %c0_78], %78 {strides = array<i32>} : memref<1x16x256xf32, #tpu.memory_space<vmem>>, vector<1x16x256xf32>,
    return
  }
  func.func @transform_0(%arg0: i32) -> (i32, i32, i32) {
    %c0_i32 = arith.constant 0 : i32
    %c0_i32_0 = arith.constant 0 : i32
    %c0_i32_1 = arith.constant 0 : i32
    return %arg0, %c0_i32, %c0_i32_0 : i32, i32, i32
  }
  func.func @transform_1(%arg0: i32) -> (i32, i32) {
    %c0_i32 = arith.constant 0 : i32
    %c0_i32_0 = arith.constant 0 : i32
    %c0_i32_1 = arith.constant 0 : i32
    return %c0_i32, %c0_i32_0 : i32, i32
  }
  func.func @transform_2(%arg0: i32) -> (i32, i32) {
    %c0_i32 = arith.constant 0 : i32
    %c0_i32_0 = arith.constant 0 : i32
    %c0_i32_1 = arith.constant 0 : i32
    return %c0_i32, %c0_i32_0 : i32, i32
  }
  func.func @transform_3(%arg0: i32) -> (i32, i32) {
    %c0_i32 = arith.constant 0 : i32
    %c0_i32_0 = arith.constant 0 : i32
    %c0_i32_1 = arith.constant 0 : i32
    return %c0_i32, %c0_i32_0 : i32, i32
  }
  func.func @transform_4(%arg0: i32) -> (i32, i32) {
    %c0_i32 = arith.constant 0 : i32
    %c0_i32_0 = arith.constant 0 : i32
    %c0_i32_1 = arith.constant 0 : i32
    return %c0_i32, %c0_i32_0 : i32, i32
  }
  func.func @transform_5(%arg0: i32) -> (i32, i32) {
    %c0_i32 = arith.constant 0 : i32
    %c0_i32_0 = arith.constant 0 : i32
    %c0_i32_1 = arith.constant 0 : i32
    return %c0_i32, %c0_i32_0 : i32, i32
  }
  func.func @transform_6(%arg0: i32) -> (i32, i32, i32) {
    %c0_i32 = arith.constant 0 : i32
    %c0_i32_0 = arith.constant 0 : i32
    %c0_i32_1 = arith.constant 0 : i32
    return %arg0, %c0_i32, %c0_i32_0 : i32, i32, i32
  }
}

</mosaic_0001>

<llo_original>
// kernel: hierar_att_dec_fused.1
$region0: #{hierar_att_dec_fused.1}
  #allocation0 [shape = 'u32[]', space=smem, size = 0x4, offset = 0x4, fixed_abs, tag = 'smem constant byte address 0x4 - core index']
  #allocation1 [shape = 'u32[72,128]{1,0:T(1,128)}', space=vmem, size = 0x9000, scoped, tag = 'internal scratch']
  #allocation2 [shape = 'f32[16,290]{1,0:T(8,128)}', space=vmem, size = 0x6000, scoped, tag = 'scratch operand']
  #allocation3 [shape = 'f32[8,290]{1,0:T(8,128)}', space=vmem, size = 0x3000, scoped, tag = 'scratch operand']
  %s0 = inlined_call_operand.vmem [shape: f32[2,16,256], index: 0, kind: input, shape index: {}]
  %s1 = inlined_call_operand.vmem [shape: f32[8,144], index: 1, kind: input, shape index: {}]
  %s2 = inlined_call_operand.vmem [shape: f32[8,1], index: 2, kind: input, shape index: {}]
  %s3 = inlined_call_operand.vmem [shape: f32[16,72], index: 3, kind: input, shape index: {}]
  %s4 = inlined_call_operand.vmem [shape: f32[16,1], index: 4, kind: input, shape index: {}]
  %s5 = inlined_call_operand.vmem [shape: f32[3,256], index: 5, kind: input, shape index: {}]
  %s6 = inlined_call_operand.vmem [shape: f32[2,16,256], index: 6, kind: output, shape index: {}]
  %s7 = sld [smem:[#allocation0]]
  $region57: #{hierar_att_dec_fused.1} parent=0
    _
  %s9 = ssub.s32 1, %s7
  %s10 = scalar_select 0, %s9, %s7
  loop: start=0, step=1, limit=4
  $region2: #{hierar_att_dec_fused.1} parent=0 // loop_pre_header
    _
  $region3: #{hierar_att_dec_fused.1} parent=0 // loop_header
    %s12 = sphi 0, %s16
    %p13 = scmp.ge.s32.totalorder %s12, 4
    %s22 = sphi 0, %s24
    %s25 = sphi 0, %s22
    %s26 = sphi 0, %s25
    %s42 = sphi 0, %s26
    %s46 = sphi 0, %s46
    %s48 = sphi 0, %s46
    %s49 = sphi 0, %s48
    %s63 = sphi 0, %s49
    %s67 = sphi 0, %s67
    %s69 = sphi 0, %s67
    %s70 = sphi 0, %s69
    %s84 = sphi 0, %s70
    %s88 = sphi 0, %s88
    %s90 = sphi 0, %s88
    %s91 = sphi 0, %s90
    %s105 = sphi 0, %s91
    %s109 = sphi 0, %s109
    %s111 = sphi 0, %s109
    %s112 = sphi 0, %s111
    %s126 = sphi 0, %s112
    %s130 = sphi 0, %s130
    %s132 = sphi 0, %s130
    %s133 = sphi 0, %s132
    %s147 = sphi 0, %s133
    %s153 = sphi 0, %s155
    %s156 = sphi 0, %s153
    %s157 = sphi 0, %s156
    %s173 = sphi 0, %s157
  $region4: #{hierar_att_dec_fused.1} parent=0 // loop_header_branch
    %15 = sbr.rel (%p13) target = $region8
  $region5: #{hierar_att_dec_fused.1} parent=0 // loop_body
    %s17 = ssub.s32 %s12, 1
    %s18 = ssub.s32 %s12, 2
    %s19 = sadd.s32 %s12, 1
    %s20 = ssub.s32 %s12, %s19
    %p21 = scmp.eq.s32.totalorder %s20, 0
    %s23 = sadd.s32 %s22, 1
    %s24 = scalar_select %p21, %s22, %s23
    %p27 = pneg %p21
    %p28 = scmp.eq.s32.totalorder %s12, 1
    %p29 = por %p27, %p28
    %p30 = scmp.ne.s32.totalorder %s22, %s25
    %p31 = scmp.eq.s32.totalorder %s12, 0
    %p32 = por %p30, %p31
    %p33 = scmp.ne.s32.totalorder %s22, %s25
    %p34 = scmp.eq.s32.totalorder %s17, 1
    %p35 = por %p33, %p34
    %p36 = scmp.ne.s32.totalorder %s25, %s26
    %p37 = scmp.eq.s32.totalorder %s17, 0
    %p38 = por %p36, %p37
    %p39 = scmp.ne.s32.totalorder %s25, %s26
    %p40 = scmp.eq.s32.totalorder %s18, 1
    %p41 = por %p39, %p40
    %p43 = scmp.ne.s32.totalorder %s26, %s42
    %p44 = scmp.eq.s32.totalorder %s18, 0
    %p45 = por %p43, %p44
    %s47 = sadd.s32 %s46, 1
    %p50 = scmp.eq.s32.totalorder %s12, 1
    %p51 = scmp.ne.s32.totalorder %s46, %s48
    %p52 = scmp.eq.s32.totalorder %s12, 0
    %p53 = por %p51, %p52
    %p54 = scmp.ne.s32.totalorder %s46, %s48
    %p55 = scmp.eq.s32.totalorder %s17, 1
    %p56 = por %p54, %p55
    %p57 = scmp.ne.s32.totalorder %s48, %s49
    %p58 = scmp.eq.s32.totalorder %s17, 0
    %p59 = por %p57, %p58
    %p60 = scmp.ne.s32.totalorder %s48, %s49
    %p61 = scmp.eq.s32.totalorder %s18, 1
    %p62 = por %p60, %p61
    %p64 = scmp.ne.s32.totalorder %s49, %s63
    %p65 = scmp.eq.s32.totalorder %s18, 0
    %p66 = por %p64, %p65
    %s68 = sadd.s32 %s67, 1
    %p71 = scmp.eq.s32.totalorder %s12, 1
    %p72 = scmp.ne.s32.totalorder %s67, %s69
    %p73 = scmp.eq.s32.totalorder %s12, 0
    %p74 = por %p72, %p73
    %p75 = scmp.ne.s32.totalorder %s67, %s69
    %p76 = scmp.eq.s32.totalorder %s17, 1
    %p77 = por %p75, %p76
    %p78 = scmp.ne.s32.totalorder %s69, %s70
    %p79 = scmp.eq.s32.totalorder %s17, 0
    %p80 = por %p78, %p79
    %p81 = scmp.ne.s32.totalorder %s69, %s70
    %p82 = scmp.eq.s32.totalorder %s18, 1
    %p83 = por %p81, %p82
    %p85 = scmp.ne.s32.totalorder %s70, %s84
    %p86 = scmp.eq.s32.totalorder %s18, 0
    %p87 = por %p85, %p86
    %s89 = sadd.s32 %s88, 1
    %p92 = scmp.eq.s32.totalorder %s12, 1
    %p93 = scmp.ne.s32.totalorder %s88, %s90
    %p94 = scmp.eq.s32.totalorder %s12, 0
    %p95 = por %p93, %p94
    %p96 = scmp.ne.s32.totalorder %s88, %s90
    %p97 = scmp.eq.s32.totalorder %s17, 1
    %p98 = por %p96, %p97
    %p99 = scmp.ne.s32.totalorder %s90, %s91
    %p100 = scmp.eq.s32.totalorder %s17, 0
    %p101 = por %p99, %p100
    %p102 = scmp.ne.s32.totalorder %s90, %s91
    %p103 = scmp.eq.s32.totalorder %s18, 1
    %p104 = por %p102, %p103
    %p106 = scmp.ne.s32.totalorder %s91, %s105
    %p107 = scmp.eq.s32.totalorder %s18, 0
    %p108 = por %p106, %p107
    %s110 = sadd.s32 %s109, 1
    %p113 = scmp.eq.s32.totalorder %s12, 1
    %p114 = scmp.ne.s32.totalorder %s109, %s111
    %p115 = scmp.eq.s32.totalorder %s12, 0
    %p116 = por %p114, %p115
    %p117 = scmp.ne.s32.totalorder %s109, %s111
    %p118 = scmp.eq.s32.totalorder %s17, 1
    %p119 = por %p117, %p118
    %p120 = scmp.ne.s32.totalorder %s111, %s112
    %p121 = scmp.eq.s32.totalorder %s17, 0
    %p122 = por %p120, %p121
    %p123 = scmp.ne.s32.totalorder %s111, %s112
    %p124 = scmp.eq.s32.totalorder %s18, 1
    %p125 = por %p123, %p124
    %p127 = scmp.ne.s32.totalorder %s112, %s126
    %p128 = scmp.eq.s32.totalorder %s18, 0
    %p129 = por %p127, %p128
    %s131 = sadd.s32 %s130, 1
    %p134 = scmp.eq.s32.totalorder %s12, 1
    %p135 = scmp.ne.s32.totalorder %s130, %s132
    %p136 = scmp.eq.s32.totalorder %s12, 0
    %p137 = por %p135, %p136
    %p138 = scmp.ne.s32.totalorder %s130, %s132
    %p139 = scmp.eq.s32.totalorder %s17, 1
    %p140 = por %p138, %p139
    %p141 = scmp.ne.s32.totalorder %s132, %s133
    %p142 = scmp.eq.s32.totalorder %s17, 0
    %p143 = por %p141, %p142
    %p144 = scmp.ne.s32.totalorder %s132, %s133
    %p145 = scmp.eq.s32.totalorder %s18, 1
    %p146 = por %p144, %p145
    %p148 = scmp.ne.s32.totalorder %s133, %s147
    %p149 = scmp.eq.s32.totalorder %s18, 0
    %p150 = por %p148, %p149
    %s151 = ssub.s32 %s12, %s19
    %p152 = scmp.eq.s32.totalorder %s151, 0
    %s154 = sadd.s32 %s153, 1
    %s155 = scalar_select %p152, %s153, %s154
    %p158 = pneg %p152
    %p159 = scmp.eq.s32.totalorder %s12, 1
    %p160 = por %p158, %p159
    %p161 = scmp.ne.s32.totalorder %s153, %s156
    %p162 = scmp.eq.s32.totalorder %s12, 0
    %p163 = por %p161, %p162
    %p164 = scmp.ne.s32.totalorder %s153, %s156
    %p165 = scmp.eq.s32.totalorder %s17, 1
    %p166 = por %p164, %p165
    %p167 = scmp.ne.s32.totalorder %s156, %s157
    %p168 = scmp.eq.s32.totalorder %s17, 0
    %p169 = por %p167, %p168
    %p170 = scmp.ne.s32.totalorder %s156, %s157
    %p171 = scmp.eq.s32.totalorder %s18, 1
    %p172 = por %p170, %p171
    %p174 = scmp.ne.s32.totalorder %s157, %s173
    %p175 = scmp.eq.s32.totalorder %s18, 0
    %p176 = por %p174, %p175
    %p177 = scmp.le.s32.totalorder 1, %s12
    %p178 = scmp.lt.s32.totalorder %s12, 3
    %p179 = pnand %p177, %p178
    %p180 = pneg %p179
    // Predicated region
    $region9: #{hierar_att_dec_fused.1} parent=5 // pred_check
      _
    $region10: #{hierar_att_dec_fused.1} parent=5 // pred_check_branch
      %182 = sbr.rel (%p179) target = $region12
    $region11: #{hierar_att_dec_fused.1} parent=5 // pred_region
      %s183 = ssub.s32 %s12, 1
      // Predicated region
      $region13: #{hierar_att_dec_fused.1} parent=11 // pred_check
        %p184 = pneg %p59
      $region14: #{hierar_att_dec_fused.1} parent=11 // pred_check_branch
        %186 = sbr.rel (%p184) target = $region16
      $region15: #{hierar_att_dec_fused.1} parent=11 // pred_region
        _
      $region16: #{hierar_att_dec_fused.1} parent=11 // pred_fallthru
        _
      // Predicated region
      $region17: #{hierar_att_dec_fused.1} parent=11 // pred_check
        %p187 = pneg %p80
      $region18: #{hierar_att_dec_fused.1} parent=11 // pred_check_branch
        %189 = sbr.rel (%p187) target = $region20
      $region19: #{hierar_att_dec_fused.1} parent=11 // pred_region
        _
      $region20: #{hierar_att_dec_fused.1} parent=11 // pred_fallthru
        _
      // Predicated region
      $region21: #{hierar_att_dec_fused.1} parent=11 // pred_check
        %p190 = pneg %p101
      $region22: #{hierar_att_dec_fused.1} parent=11 // pred_check_branch
        %192 = sbr.rel (%p190) target = $region24
      $region23: #{hierar_att_dec_fused.1} parent=11 // pred_region
        _
      $region24: #{hierar_att_dec_fused.1} parent=11 // pred_fallthru
        _
      // Predicated region
      $region25: #{hierar_att_dec_fused.1} parent=11 // pred_check
        %p193 = pneg %p122
      $region26: #{hierar_att_dec_fused.1} parent=11 // pred_check_branch
        %195 = sbr.rel (%p193) target = $region28
      $region27: #{hierar_att_dec_fused.1} parent=11 // pred_region
        _
      $region28: #{hierar_att_dec_fused.1} parent=11 // pred_fallthru
        _
      // Predicated region
      $region29: #{hierar_att_dec_fused.1} parent=11 // pred_check
        %p196 = pneg %p143
      $region30: #{hierar_att_dec_fused.1} parent=11 // pred_check_branch
        %198 = sbr.rel (%p196) target = $region32
      $region31: #{hierar_att_dec_fused.1} parent=11 // pred_region
        _
      $region32: #{hierar_att_dec_fused.1} parent=11 // pred_fallthru
        _
    $region12: #{hierar_att_dec_fused.1} parent=5 // pred_fallthru
      _
    %p199 = scmp.lt.s32.totalorder %s12, 2
    // Predicated region
    $region33: #{hierar_att_dec_fused.1} parent=5 // pred_check
      %p200 = pneg %p199
    $region34: #{hierar_att_dec_fused.1} parent=5 // pred_check_branch
      %202 = sbr.rel (%p200) target = $region36
    $region35: #{hierar_att_dec_fused.1} parent=5 // pred_region
      // Predicated region
      $region37: #{hierar_att_dec_fused.1} parent=35 // pred_check
        %p203 = pneg %p32
      $region38: #{hierar_att_dec_fused.1} parent=35 // pred_check_branch
        %205 = sbr.rel (%p203) target = $region40
      $region39: #{hierar_att_dec_fused.1} parent=35 // pred_region
        %p206 = scmp.lt.s32.totalorder %s12, 1
        %s207 = scalar_select %p206, %s12, 1
        %s208 = smul.addr %s207, 4
        %s209 = smul.addr %s208, 8
        %s210 = scalar_lea.vmem %s0, %s209
      $region40: #{hierar_att_dec_fused.1} parent=35 // pred_fallthru
        _
    $region36: #{hierar_att_dec_fused.1} parent=5 // pred_fallthru
      _
    %p211 = scmp.le.s32.totalorder 1, %s12
    %p212 = scmp.lt.s32.totalorder %s12, 3
    %p213 = pnand %p211, %p212
    %p214 = pneg %p213
    // Predicated region
    $region41: #{hierar_att_dec_fused.1} parent=5 // pred_check
      _
    $region42: #{hierar_att_dec_fused.1} parent=5 // pred_check_branch
      %216 = sbr.rel (%p213) target = $region44
    $region43: #{hierar_att_dec_fused.1} parent=5 // pred_region
      %s217 = ssub.s32 %s12, 1
      %p218 = scmp.lt.s32.totalorder %s17, 1
      %s219 = scalar_select %p218, %s17, 1
      %s220 = smul.addr %s219, 4
      %s221 = smul.addr %s220, 8
      %s222 = scalar_lea.vmem %s0, %s221
      %p223 = pneg %p38
      %p224 = pneg %p35
      %p225 = pneg %p59
      %p226 = pneg %p56
      %p227 = pneg %p80
      %p228 = pneg %p77
      %p229 = pneg %p101
      %p230 = pneg %p98
      %p231 = pneg %p122
      %p232 = pneg %p119
      %p233 = pneg %p143
      %p234 = pneg %p140
      %p235 = pneg %p169
      %p236 = pneg %p166
      %p237 = scmp.lt.s32.totalorder %s17, 1
      %s238 = scalar_select %p237, %s17, 1
      %s239 = smul.addr %s238, 4
      %s240 = smul.addr %s239, 8
      %s241 = scalar_lea.vmem %s6, %s240
      %p242 = scmp.lt.s32.totalorder %s17, 1
      %s243 = scalar_select %p242, %s17, 1
      %s244 = smul.addr %s243, 4
      %s245 = smul.addr %s244, 8
      %s246 = scalar_lea.vmem %s0, %s245
      %p247 = scmp.lt.s32.totalorder %s17, 1
      %s248 = scalar_select %p247, %s17, 1
      %s249 = smul.addr %s248, 4
      %s250 = smul.addr %s249, 8
      %s251 = scalar_lea.vmem %s6, %s250
      %v252 = vld [vmem:[%s246] sm:$0xff]
      %v253 = vld [vmem:[%s246 + $0x8] sm:$0xff]
      %v254 = vld [vmem:[%s246 + $0x10] sm:$0xff]
      %v255 = vld [vmem:[%s246 + $0x18] sm:$0xff]
      %v256 = vld [vmem:[%s1] sm:$0xff]
      %v257 = vld [vmem:[%s1 + $0x8] sm:$0xff]
      %v258 = vld [vmem:[%s2] sm:$0xff]
      %vm259 = vcmask 138240
      %260 = vst.msk [vmem:[#allocation2] sm:$0xff] %vm259, 0.0
      %261 = vst.msk [vmem:[#allocation2 + $0x18] sm:$0xff] %vm259, 0.0
      %vm262 = vcmask 277640
      %263 = vst.msk [vmem:[#allocation2 + $0x10] sm:$0xff] %vm262, 0.0
      %264 = vst.msk [vmem:[#allocation2 + $0x28] sm:$0xff] %vm262, 0.0
      %269 = vrot.lane.b32.xlu0 %v252, 17
      %v270 = vpop.permute.xlu0 %269
      %271 = vrot.lane.b32.xlu0 %v253, 17
      %v272 = vpop.permute.xlu0 %271
      %273 = vrot.lane.b32.xlu0 %v254, 17
      %v274 = vpop.permute.xlu0 %273
      %275 = vrot.lane.b32.xlu0 %v255, 17
      %v276 = vpop.permute.xlu0 %275
      %v277 = vsel %vm259, %v270, %v272
      %v278 = vsel %vm259, %v274, %v276
      %vm285 = vcmask 1047688
      %286 = vst.msk [vmem:[#allocation2] sm:$0xff] %vm285, %v270
      %287 = vst [vmem:[#allocation2 + $0x8] sm:$0xff] %v277
      %288 = vst.msk [vmem:[#allocation2 + $0x10] sm:$0xff] %vm259, %v272
      %289 = vst.msk [vmem:[#allocation2 + $0x18] sm:$0xff] %vm285, %v274
      %290 = vst [vmem:[#allocation2 + $0x20] sm:$0xff] %v278
      %291 = vst.msk [vmem:[#allocation2 + $0x28] sm:$0xff] %vm259, %v276
      %v292 = vld [vmem:[#allocation2] sm:$0xff]
      %v293 = vld [vmem:[#allocation2 + $0x8] sm:$0xff]
      %v294 = vld [vmem:[#allocation2 + $0x18] sm:$0xff]
      %v295 = vld [vmem:[#allocation2 + $0x20] sm:$0xff]
      %v296 = vld [vmem:[%s5] ss:$4 sm:$0x3]
      %v298 = vperm.slane %v296, 0
      %v299 = vperm.slane %v296, 1
      %v302 = vmul.f32 %v292, %v298
      %v303 = vmul.f32 %v293, %v299
      %v304 = vmul.f32 %v294, %v298
      %v305 = vmul.f32 %v295, %v299
      %v306 = vld [vmem:[#allocation2 + $0x10] sm:$0xff]
      %v307 = vld [vmem:[#allocation2 + $0x28] sm:$0xff]
      %s308 = scalar_lea.vmem %s5, 2
      %v309 = vld [vmem:[%s308] ss:$4 sm:$0x3]
      %v311 = vperm.slane %v309, 0
      %v312 = vperm.slane %v309, 1
      %313 = vrot.lane.b32.xlu0 %v311, 2
      %v314 = vpop.permute.xlu0 %313
      %315 = vrot.lane.b32.xlu0 %v312, 2
      %v316 = vpop.permute.xlu0 %315
      %vm317 = vcmask 15360
      %v318 = vsel %vm317, %v314, %v316
      %v322 = vmul.f32 %v292, %v314
      %v323 = vmul.f32 %v293, %v318
      %v324 = vmul.f32 %v306, %v316
      %v325 = vmul.f32 %v294, %v314
      %v326 = vmul.f32 %v295, %v318
      %v327 = vmul.f32 %v307, %v316
      %328 = vrot.lane.b32.xlu0 %v298, 16
      %v329 = vpop.permute.xlu0 %328
      %330 = vrot.lane.b32.xlu0 %v299, 16
      %v331 = vpop.permute.xlu0 %330
      %vm332 = vcmask 130048
      %v333 = vsel %vm332, %v329, %v331
      %v337 = vmul.f32 %v292, %v329
      %v338 = vmul.f32 %v293, %v333
      %v339 = vmul.f32 %v306, %v331
      %v340 = vmul.f32 %v294, %v329
      %v341 = vmul.f32 %v295, %v333
      %v342 = vmul.f32 %v307, %v331
      %343 = vrot.lane.b32.xlu0 %v311, 18
      %v344 = vpop.permute.xlu0 %343
      %345 = vrot.lane.b32.xlu0 %v312, 18
      %v346 = vpop.permute.xlu0 %345
      %vm347 = vcmask 146432
      %v348 = vsel %vm347, %v344, %v346
      %v352 = vmul.f32 %v292, %v344
      %v353 = vmul.f32 %v293, %v348
      %v354 = vmul.f32 %v306, %v346
      %v355 = vmul.f32 %v294, %v344
      %v356 = vmul.f32 %v295, %v348
      %v357 = vmul.f32 %v307, %v346
      %358 = vrot.lane.b32.xlu0 %v298, 32
      %v359 = vpop.permute.xlu0 %358
      %360 = vrot.lane.b32.xlu0 %v299, 32
      %v361 = vpop.permute.xlu0 %360
      %vm362 = vcmask 261120
      %v363 = vsel %vm362, %v359, %v361
      %v367 = vmul.f32 %v292, %v359
      %v368 = vmul.f32 %v293, %v363
      %v369 = vmul.f32 %v306, %v361
      %v370 = vmul.f32 %v294, %v359
      %v371 = vmul.f32 %v295, %v363
      %v372 = vmul.f32 %v307, %v361
      %373 = vrot.lane.b32.xlu0 %v311, 34
      %v374 = vpop.permute.xlu0 %373
      %375 = vrot.lane.b32.xlu0 %v312, 34
      %v376 = vpop.permute.xlu0 %375
      %vm377 = vcmask 277504
      %v378 = vsel %vm377, %v374, %v376
      %v382 = vmul.f32 %v292, %v374
      %v383 = vmul.f32 %v293, %v378
      %v384 = vmul.f32 %v306, %v376
      %v385 = vmul.f32 %v294, %v374
      %v386 = vmul.f32 %v295, %v378
      %v387 = vmul.f32 %v307, %v376
      %394 = vrot.lane.b32.xlu0 %v292, 127
      %v395 = vpop.permute.xlu0 %394
      %396 = vrot.lane.b32.xlu0 %v293, 127
      %v397 = vpop.permute.xlu0 %396
      %398 = vrot.lane.b32.xlu0 %v306, 127
      %v399 = vpop.permute.xlu0 %398
      %400 = vrot.lane.b32.xlu0 %v294, 127
      %v401 = vpop.permute.xlu0 %400
      %402 = vrot.lane.b32.xlu0 %v295, 127
      %v403 = vpop.permute.xlu0 %402
      %404 = vrot.lane.b32.xlu0 %v307, 127
      %v405 = vpop.permute.xlu0 %404
      %vm406 = vcmask 1039360
      %v407 = vsel %vm406, %v395, %v397
      %v408 = vsel %vm406, %v397, %v399
      %v409 = vsel %vm406, %v401, %v403
      %v410 = vsel %vm406, %v403, %v405
      %421 = vrot.lane.b32.xlu0 %v322, 126
      %v422 = vpop.permute.xlu0 %421
      %423 = vrot.lane.b32.xlu0 %v323, 126
      %v424 = vpop.permute.xlu0 %423
      %425 = vrot.lane.b32.xlu0 %v324, 126
      %v426 = vpop.permute.xlu0 %425
      %427 = vrot.lane.b32.xlu0 %v325, 126
      %v428 = vpop.permute.xlu0 %427
      %429 = vrot.lane.b32.xlu0 %v326, 126
      %v430 = vpop.permute.xlu0 %429
      %431 = vrot.lane.b32.xlu0 %v327, 126
      %v432 = vpop.permute.xlu0 %431
      %vm433 = vcmask 1031168
      %v434 = vsel %vm433, %v422, %v424
      %v435 = vsel %vm433, %v424, %v426
      %v436 = vsel %vm433, %v428, %v430
      %v437 = vsel %vm433, %v430, %v432
      %448 = vrot.lane.b32.xlu0 %v337, 112
      %v449 = vpop.permute.xlu0 %448
      %450 = vrot.lane.b32.xlu0 %v338, 112
      %v451 = vpop.permute.xlu0 %450
      %452 = vrot.lane.b32.xlu0 %v339, 112
      %v453 = vpop.permute.xlu0 %452
      %454 = vrot.lane.b32.xlu0 %v340, 112
      %v455 = vpop.permute.xlu0 %454
      %456 = vrot.lane.b32.xlu0 %v341, 112
      %v457 = vpop.permute.xlu0 %456
      %458 = vrot.lane.b32.xlu0 %v342, 112
      %v459 = vpop.permute.xlu0 %458
      %vm460 = vcmask 916480
      %v461 = vsel %vm460, %v449, %v451
      %v462 = vsel %vm460, %v451, %v453
      %v463 = vsel %vm460, %v455, %v457
      %v464 = vsel %vm460, %v457, %v459
      %469 = vrot.lane.b32.xlu0 %v292, 111
      %v470 = vpop.permute.xlu0 %469
      %471 = vrot.lane.b32.xlu0 %v293, 111
      %v472 = vpop.permute.xlu0 %471
      %473 = vrot.lane.b32.xlu0 %v306, 111
      %v474 = vpop.permute.xlu0 %473
      %475 = vrot.lane.b32.xlu0 %v294, 111
      %v476 = vpop.permute.xlu0 %475
      %477 = vrot.lane.b32.xlu0 %v295, 111
      %v478 = vpop.permute.xlu0 %477
      %479 = vrot.lane.b32.xlu0 %v307, 111
      %v480 = vpop.permute.xlu0 %479
      %vm481 = vcmask 908288
      %v482 = vsel %vm481, %v470, %v472
      %v483 = vsel %vm481, %v472, %v474
      %v484 = vsel %vm481, %v476, %v478
      %v485 = vsel %vm481, %v478, %v480
      %496 = vrot.lane.b32.xlu0 %v352, 110
      %v497 = vpop.permute.xlu0 %496
      %498 = vrot.lane.b32.xlu0 %v353, 110
      %v499 = vpop.permute.xlu0 %498
      %500 = vrot.lane.b32.xlu0 %v354, 110
      %v501 = vpop.permute.xlu0 %500
      %502 = vrot.lane.b32.xlu0 %v355, 110
      %v503 = vpop.permute.xlu0 %502
      %504 = vrot.lane.b32.xlu0 %v356, 110
      %v505 = vpop.permute.xlu0 %504
      %506 = vrot.lane.b32.xlu0 %v357, 110
      %v507 = vpop.permute.xlu0 %506
      %vm508 = vcmask 900096
      %v509 = vsel %vm508, %v497, %v499
      %v510 = vsel %vm508, %v499, %v501
      %v511 = vsel %vm508, %v503, %v505
      %v512 = vsel %vm508, %v505, %v507
      %523 = vrot.lane.b32.xlu0 %v367, 96
      %v524 = vpop.permute.xlu0 %523
      %525 = vrot.lane.b32.xlu0 %v368, 96
      %v526 = vpop.permute.xlu0 %525
      %527 = vrot.lane.b32.xlu0 %v369, 96
      %v528 = vpop.permute.xlu0 %527
      %529 = vrot.lane.b32.xlu0 %v370, 96
      %v530 = vpop.permute.xlu0 %529
      %531 = vrot.lane.b32.xlu0 %v371, 96
      %v532 = vpop.permute.xlu0 %531
      %533 = vrot.lane.b32.xlu0 %v372, 96
      %v534 = vpop.permute.xlu0 %533
      %vm535 = vcmask 785408
      %v536 = vsel %vm535, %v524, %v526
      %v537 = vsel %vm535, %v526, %v528
      %v538 = vsel %vm535, %v530, %v532
      %v539 = vsel %vm535, %v532, %v534
      %544 = vrot.lane.b32.xlu0 %v292, 95
      %v545 = vpop.permute.xlu0 %544
      %546 = vrot.lane.b32.xlu0 %v293, 95
      %v547 = vpop.permute.xlu0 %546
      %548 = vrot.lane.b32.xlu0 %v306, 95
      %v549 = vpop.permute.xlu0 %548
      %550 = vrot.lane.b32.xlu0 %v294, 95
      %v551 = vpop.permute.xlu0 %550
      %552 = vrot.lane.b32.xlu0 %v295, 95
      %v553 = vpop.permute.xlu0 %552
      %554 = vrot.lane.b32.xlu0 %v307, 95
      %v555 = vpop.permute.xlu0 %554
      %vm556 = vcmask 777216
      %v557 = vsel %vm556, %v545, %v547
      %v558 = vsel %vm556, %v547, %v549
      %v559 = vsel %vm556, %v551, %v553
      %v560 = vsel %vm556, %v553, %v555
      %571 = vrot.lane.b32.xlu0 %v382, 94
      %v572 = vpop.permute.xlu0 %571
      %573 = vrot.lane.b32.xlu0 %v383, 94
      %v574 = vpop.permute.xlu0 %573
      %575 = vrot.lane.b32.xlu0 %v384, 94
      %v576 = vpop.permute.xlu0 %575
      %577 = vrot.lane.b32.xlu0 %v385, 94
      %v578 = vpop.permute.xlu0 %577
      %579 = vrot.lane.b32.xlu0 %v386, 94
      %v580 = vpop.permute.xlu0 %579
      %581 = vrot.lane.b32.xlu0 %v387, 94
      %v582 = vpop.permute.xlu0 %581
      %vm583 = vcmask 769024
      %v584 = vsel %vm583, %v572, %v574
      %v585 = vsel %vm583, %v574, %v576
      %v586 = vsel %vm583, %v578, %v580
      %v587 = vsel %vm583, %v580, %v582
      %593 = vset.pattern.permute.xlu0 0
      %594 = vperm.xlu0 %593, %v258
      %v595 = vpop.permute.xlu0 %594
      %v598 = vsel %vm332, %v257, 0
      %600 = vmatpush.msra.mxu0 %v559
      %601 = vmatpush.msra.mxu0 %v557
      %602 = vmatpush.msra.mxu0 %v538
      %603 = vmatpush.msra.mxu0 %v536
      %604 = vmatpush.msra.mxu0 %v511
      %605 = vmatpush.msra.mxu0 %v509
      %606 = vmatpush.msra.mxu0 %v484
      %607 = vmatpush.msra.mxu0 %v482
      %608 = vmatpush.msra.mxu0 %v463
      %609 = vmatpush.msra.mxu0 %v461
      %610 = vmatpush.msra.mxu0 %v436
      %611 = vmatpush.msra.mxu0 %v434
      %612 = vmatpush.msra.mxu0 %v409
      %613 = vmatpush.msra.mxu0 %v407
      %614 = vmatpush.msra.mxu0 %v304
      %615 = vmatpush.msra.mxu0 %v302
      %616 = vmatmul.f32.gmra.mxu0 %v256
      %v617 = vpop.f32.mrf.mxu0
      %v618 = vadd.f32 %v595, %v617
      %619 = vdwg.mxu0
      %620 = vmatpush.msra.mxu0 0.0
      %621 = vmatpush.msra.mxu0 0.0
      %622 = vmatpush.msra.mxu0 0.0
      %623 = vmatpush.msra.mxu0 0.0
      %624 = vmatpush.msra.mxu0 0.0
      %625 = vmatpush.msra.mxu0 0.0
      %626 = vmatpush.msra.mxu0 0.0
      %627 = vmatpush.msra.mxu0 0.0
      %628 = vmatpush.msra.mxu0 0.0
      %629 = vmatpush.msra.mxu0 0.0
      %630 = vmatpush.msra.mxu0 0.0
      %631 = vmatpush.msra.mxu0 0.0
      %632 = vmatpush.msra.mxu0 0.0
      %633 = vmatpush.msra.mxu0 0.0
      %634 = vmatpush.msra.mxu0 %v586
      %635 = vmatpush.msra.mxu0 %v584
      %636 = vmatmul.f32.gmra.mxu0 %v598
      %v637 = vpop.f32.mrf.mxu0
      %v638 = vadd.f32 %v618, %v637
      %639 = vdwg.mxu0
      %640 = vmatpush.msra.mxu0 %v560
      %641 = vmatpush.msra.mxu0 %v558
      %642 = vmatpush.msra.mxu0 %v539
      %643 = vmatpush.msra.mxu0 %v537
      %644 = vmatpush.msra.mxu0 %v512
      %645 = vmatpush.msra.mxu0 %v510
      %646 = vmatpush.msra.mxu0 %v485
      %647 = vmatpush.msra.mxu0 %v483
      %648 = vmatpush.msra.mxu0 %v464
      %649 = vmatpush.msra.mxu0 %v462
      %650 = vmatpush.msra.mxu0 %v437
      %651 = vmatpush.msra.mxu0 %v435
      %652 = vmatpush.msra.mxu0 %v410
      %653 = vmatpush.msra.mxu0 %v408
      %654 = vmatpush.msra.mxu0 %v305
      %655 = vmatpush.msra.mxu0 %v303
      %656 = vmatmul.f32.gmra.mxu0 %v256
      %v657 = vpop.f32.mrf.mxu0
      %v658 = vadd.f32 %v595, %v657
      %659 = vdwg.mxu0
      %660 = vmatpush.msra.mxu0 0.0
      %661 = vmatpush.msra.mxu0 0.0
      %662 = vmatpush.msra.mxu0 0.0
      %663 = vmatpush.msra.mxu0 0.0
      %664 = vmatpush.msra.mxu0 0.0
      %665 = vmatpush.msra.mxu0 0.0
      %666 = vmatpush.msra.mxu0 0.0
      %667 = vmatpush.msra.mxu0 0.0
      %668 = vmatpush.msra.mxu0 0.0
      %669 = vmatpush.msra.mxu0 0.0
      %670 = vmatpush.msra.mxu0 0.0
      %671 = vmatpush.msra.mxu0 0.0
      %672 = vmatpush.msra.mxu0 0.0
      %673 = vmatpush.msra.mxu0 0.0
      %674 = vmatpush.msra.mxu0 %v587
      %675 = vmatpush.msra.mxu0 %v585
      %676 = vmatmul.f32.gmra.mxu0 %v598
      %v677 = vpop.f32.mrf.mxu0
      %v678 = vadd.f32 %v658, %v677
      %679 = vdwg.mxu0
      %v680 = vld [vmem:[%s3] sm:$0xff]
      %v681 = vld [vmem:[%s3 + $0x8] sm:$0xff]
      %v682 = vld [vmem:[%s4] sm:$0xff]
      %v683 = vld [vmem:[%s4 + $0x8] sm:$0xff]
      %684 = vst.msk [vmem:[#allocation3] sm:$0xff] %vm259, 0.0
      %685 = vst.msk [vmem:[#allocation3 + $0x10] sm:$0xff] %vm262, 0.0
      %688 = vrot.lane.b32.xlu0 %v638, 17
      %v689 = vpop.permute.xlu0 %688
      %690 = vrot.lane.b32.xlu0 %v678, 17
      %v691 = vpop.permute.xlu0 %690
      %v692 = vsel %vm259, %v689, %v691
      %696 = vst.msk [vmem:[#allocation3] sm:$0xff] %vm285, %v689
      %697 = vst [vmem:[#allocation3 + $0x8] sm:$0xff] %v692
      %698 = vst.msk [vmem:[#allocation3 + $0x10] sm:$0xff] %vm259, %v691
      %v699 = vld [vmem:[#allocation3] sm:$0xff]
      %v700 = vld [vmem:[#allocation3 + $0x8] sm:$0xff]
      %v701 = vld [vmem:[%s5] ss:$4 sm:$0x3]
      %v703 = vperm.slane %v701, 0
      %v704 = vperm.slane %v701, 1
      %v707 = vmul.f32 %v699, %v703
      %v708 = vmul.f32 %v700, %v704
      %v709 = vld [vmem:[#allocation3 + $0x10] sm:$0xff]
      %v710 = vld [vmem:[%s308] ss:$4 sm:$0x3]
      %v712 = vperm.slane %v710, 0
      %v713 = vperm.slane %v710, 1
      %714 = vrot.lane.b32.xlu0 %v712, 2
      %v715 = vpop.permute.xlu0 %714
      %716 = vrot.lane.b32.xlu0 %v713, 2
      %v717 = vpop.permute.xlu0 %716
      %v718 = vsel %vm317, %v715, %v717
      %v722 = vmul.f32 %v699, %v715
      %v723 = vmul.f32 %v700, %v718
      %v724 = vmul.f32 %v709, %v717
      %725 = vrot.lane.b32.xlu0 %v703, 16
      %v726 = vpop.permute.xlu0 %725
      %727 = vrot.lane.b32.xlu0 %v704, 16
      %v728 = vpop.permute.xlu0 %727
      %v729 = vsel %vm332, %v726, %v728
      %v733 = vmul.f32 %v699, %v726
      %v734 = vmul.f32 %v700, %v729
      %v735 = vmul.f32 %v709, %v728
      %736 = vrot.lane.b32.xlu0 %v712, 18
      %v737 = vpop.permute.xlu0 %736
      %738 = vrot.lane.b32.xlu0 %v713, 18
      %v739 = vpop.permute.xlu0 %738
      %v740 = vsel %vm347, %v737, %v739
      %v744 = vmul.f32 %v699, %v737
      %v745 = vmul.f32 %v700, %v740
      %v746 = vmul.f32 %v709, %v739
      %747 = vrot.lane.b32.xlu0 %v703, 32
      %v748 = vpop.permute.xlu0 %747
      %749 = vrot.lane.b32.xlu0 %v704, 32
      %v750 = vpop.permute.xlu0 %749
      %v751 = vsel %vm362, %v748, %v750
      %v755 = vmul.f32 %v699, %v748
      %v756 = vmul.f32 %v700, %v751
      %v757 = vmul.f32 %v709, %v750
      %758 = vrot.lane.b32.xlu0 %v712, 34
      %v759 = vpop.permute.xlu0 %758
      %760 = vrot.lane.b32.xlu0 %v713, 34
      %v761 = vpop.permute.xlu0 %760
      %v762 = vsel %vm377, %v759, %v761
      %v766 = vmul.f32 %v699, %v759
      %v767 = vmul.f32 %v700, %v762
      %v768 = vmul.f32 %v709, %v761
      %772 = vrot.lane.b32.xlu0 %v699, 127
      %v773 = vpop.permute.xlu0 %772
      %774 = vrot.lane.b32.xlu0 %v700, 127
      %v775 = vpop.permute.xlu0 %774
      %776 = vrot.lane.b32.xlu0 %v709, 127
      %v777 = vpop.permute.xlu0 %776
      %v778 = vsel %vm406, %v773, %v775
      %v779 = vsel %vm406, %v775, %v777
      %785 = vrot.lane.b32.xlu0 %v722, 126
      %v786 = vpop.permute.xlu0 %785
      %787 = vrot.lane.b32.xlu0 %v723, 126
      %v788 = vpop.permute.xlu0 %787
      %789 = vrot.lane.b32.xlu0 %v724, 126
      %v790 = vpop.permute.xlu0 %789
      %v791 = vsel %vm433, %v786, %v788
      %v792 = vsel %vm433, %v788, %v790
      %798 = vrot.lane.b32.xlu0 %v733, 112
      %v799 = vpop.permute.xlu0 %798
      %800 = vrot.lane.b32.xlu0 %v734, 112
      %v801 = vpop.permute.xlu0 %800
      %802 = vrot.lane.b32.xlu0 %v735, 112
      %v803 = vpop.permute.xlu0 %802
      %v804 = vsel %vm460, %v799, %v801
      %v805 = vsel %vm460, %v801, %v803
      %808 = vrot.lane.b32.xlu0 %v699, 111
      %v809 = vpop.permute.xlu0 %808
      %810 = vrot.lane.b32.xlu0 %v700, 111
      %v811 = vpop.permute.xlu0 %810
      %812 = vrot.lane.b32.xlu0 %v709, 111
      %v813 = vpop.permute.xlu0 %812
      %v814 = vsel %vm481, %v809, %v811
      %v815 = vsel %vm481, %v811, %v813
      %821 = vrot.lane.b32.xlu0 %v744, 110
      %v822 = vpop.permute.xlu0 %821
      %823 = vrot.lane.b32.xlu0 %v745, 110
      %v824 = vpop.permute.xlu0 %823
      %825 = vrot.lane.b32.xlu0 %v746, 110
      %v826 = vpop.permute.xlu0 %825
      %v827 = vsel %vm508, %v822, %v824
      %v828 = vsel %vm508, %v824, %v826
      %834 = vrot.lane.b32.xlu0 %v755, 96
      %v835 = vpop.permute.xlu0 %834
      %836 = vrot.lane.b32.xlu0 %v756, 96
      %v837 = vpop.permute.xlu0 %836
      %838 = vrot.lane.b32.xlu0 %v757, 96
      %v839 = vpop.permute.xlu0 %838
      %v840 = vsel %vm535, %v835, %v837
      %v841 = vsel %vm535, %v837, %v839
      %844 = vrot.lane.b32.xlu0 %v699, 95
      %v845 = vpop.permute.xlu0 %844
      %846 = vrot.lane.b32.xlu0 %v700, 95
      %v847 = vpop.permute.xlu0 %846
      %848 = vrot.lane.b32.xlu0 %v709, 95
      %v849 = vpop.permute.xlu0 %848
      %v850 = vsel %vm556, %v845, %v847
      %v851 = vsel %vm556, %v847, %v849
      %857 = vrot.lane.b32.xlu0 %v766, 94
      %v858 = vpop.permute.xlu0 %857
      %859 = vrot.lane.b32.xlu0 %v767, 94
      %v860 = vpop.permute.xlu0 %859
      %861 = vrot.lane.b32.xlu0 %v768, 94
      %v862 = vpop.permute.xlu0 %861
      %v863 = vsel %vm583, %v858, %v860
      %v864 = vsel %vm583, %v860, %v862
      %868 = vset.pattern.permute.xlu0 0
      %869 = vperm.xlu0 %868, %v682
      %v870 = vpop.permute.xlu0 %869
      %873 = vset.pattern.permute.xlu0 0
      %874 = vperm.xlu0 %873, %v683
      %v875 = vpop.permute.xlu0 %874
      %vm877 = vcmask 588800
      %v879 = vsel %vm877, %v680, 0
      %v882 = vsel %vm877, %v681, 0
      %884 = vmatpush.msra.mxu0 0.0
      %885 = vmatpush.msra.mxu0 0.0
      %886 = vmatpush.msra.mxu0 0.0
      %887 = vmatpush.msra.mxu0 0.0
      %888 = vmatpush.msra.mxu0 0.0
      %889 = vmatpush.msra.mxu0 0.0
      %890 = vmatpush.msra.mxu0 0.0
      %891 = vmatpush.msra.mxu0 %v863
      %892 = vmatpush.msra.mxu0 %v850
      %893 = vmatpush.msra.mxu0 %v840
      %894 = vmatpush.msra.mxu0 %v827
      %895 = vmatpush.msra.mxu0 %v814
      %896 = vmatpush.msra.mxu0 %v804
      %897 = vmatpush.msra.mxu0 %v791
      %898 = vmatpush.msra.mxu0 %v778
      %899 = vmatpush.msra.mxu0 %v707
      %900 = vmatmul.f32.gmra.mxu0 %v879
      %v901 = vpop.f32.mrf.mxu0
      %v902 = vadd.f32 %v870, %v901
      %903 = vmatmul.f32.gmra.mxu0 %v882
      %v904 = vpop.f32.mrf.mxu0
      %v905 = vadd.f32 %v875, %v904
      %906 = vdwg.mxu0
      %907 = vmatpush.msra.mxu0 0.0
      %908 = vmatpush.msra.mxu0 0.0
      %909 = vmatpush.msra.mxu0 0.0
      %910 = vmatpush.msra.mxu0 0.0
      %911 = vmatpush.msra.mxu0 0.0
      %912 = vmatpush.msra.mxu0 0.0
      %913 = vmatpush.msra.mxu0 0.0
      %914 = vmatpush.msra.mxu0 %v864
      %915 = vmatpush.msra.mxu0 %v851
      %916 = vmatpush.msra.mxu0 %v841
      %917 = vmatpush.msra.mxu0 %v828
      %918 = vmatpush.msra.mxu0 %v815
      %919 = vmatpush.msra.mxu0 %v805
      %920 = vmatpush.msra.mxu0 %v792
      %921 = vmatpush.msra.mxu0 %v779
      %922 = vmatpush.msra.mxu0 %v708
      %923 = vmatmul.f32.gmra.mxu0 %v879
      %v924 = vpop.f32.mrf.mxu0
      %v925 = vadd.f32 %v870, %v924
      %926 = vmatmul.f32.gmra.mxu0 %v882
      %v927 = vpop.f32.mrf.mxu0
      %v928 = vadd.f32 %v875, %v927
      %929 = vdwg.mxu0
      %930 = vst [vmem:[%s251] sm:$0xff] %v902
      %931 = vst [vmem:[%s251 + $0x8] sm:$0xff] %v925
      %932 = vst [vmem:[%s251 + $0x10] sm:$0xff] %v905
      %933 = vst [vmem:[%s251 + $0x18] sm:$0xff] %v928
      %p934 = scmp.lt.s32.totalorder %s17, 1
      %s935 = scalar_select %p934, %s17, 1
      %s936 = smul.addr %s935, 4
      %s937 = smul.addr %s936, 8
      %s938 = scalar_lea.vmem %s6, %s937
      // Predicated region
      $region45: #{hierar_att_dec_fused.1} parent=43 // pred_check
        %p939 = pneg %p166
      $region46: #{hierar_att_dec_fused.1} parent=43 // pred_check_branch
        %941 = sbr.rel (%p939) target = $region48
      $region47: #{hierar_att_dec_fused.1} parent=43 // pred_region
        _
      $region48: #{hierar_att_dec_fused.1} parent=43 // pred_fallthru
        _
    $region44: #{hierar_att_dec_fused.1} parent=5 // pred_fallthru
      _
    %p942 = scmp.le.s32.totalorder 2, %s12
    // Predicated region
    $region49: #{hierar_att_dec_fused.1} parent=5 // pred_check
      %p943 = pneg %p942
    $region50: #{hierar_att_dec_fused.1} parent=5 // pred_check_branch
      %945 = sbr.rel (%p943) target = $region52
    $region51: #{hierar_att_dec_fused.1} parent=5 // pred_region
      %s946 = ssub.s32 %s12, 2
      // Predicated region
      $region53: #{hierar_att_dec_fused.1} parent=51 // pred_check
        %p947 = pneg %p172
      $region54: #{hierar_att_dec_fused.1} parent=51 // pred_check_branch
        %949 = sbr.rel (%p947) target = $region56
      $region55: #{hierar_att_dec_fused.1} parent=51 // pred_region
        %p950 = scmp.lt.s32.totalorder %s18, 1
        %s951 = scalar_select %p950, %s18, 1
        %s952 = smul.addr %s951, 4
        %s953 = smul.addr %s952, 8
        %s954 = scalar_lea.vmem %s6, %s953
      $region56: #{hierar_att_dec_fused.1} parent=51 // pred_fallthru
        _
    $region52: #{hierar_att_dec_fused.1} parent=5 // pred_fallthru
      _
  $region6: #{hierar_att_dec_fused.1} parent=0 // loop_footer
    %s16 = sadd.s32 1, %s12
  $region7: #{hierar_att_dec_fused.1} parent=0 // loop_footer_branch
    %11 = sbr.rel target = $region3
  $region8: #{hierar_att_dec_fused.1} parent=0 // loop_exit
    _

</llo_original>
